<compile_context>
chip_gen: v5e
topology: v5e:2x2
jax: 0.10.0
libtpu: 0.0.40
codegen_flags: <defaults>
</compile_context>

<pallas_src>
import jax
import jax.numpy as jnp
from jax.experimental import pallas as pl
from jax.experimental.pallas import tpu as pltpu


def _round_up(x, m):
    return (x + m - 1) // m * m


# --------------------------------------------------------------------------
# Fused 3-layer MLP kernel: o = relu(relu(relu(x@W1+b1)@W2+b2)@W3+b3)
# --------------------------------------------------------------------------
def _mlp_kernel(x_ref, w1_ref, b1_ref, w2_ref, b2_ref, w3_ref, b3_ref, o_ref):
    h = jnp.dot(x_ref[...], w1_ref[...], preferred_element_type=jnp.float32)
    h = jnp.maximum(h + b1_ref[...], 0.0)
    h = jnp.dot(h, w2_ref[...], preferred_element_type=jnp.float32)
    h = jnp.maximum(h + b2_ref[...], 0.0)
    h = jnp.dot(h, w3_ref[...], preferred_element_type=jnp.float32)
    h = jnp.maximum(h + b3_ref[...], 0.0)
    o_ref[...] = h.astype(o_ref.dtype)


def mlp_forward(x, params):
    """x: (..., C) float array; params hold PyTorch-layout Linear weights."""
    lead_shape = x.shape[:-1]
    C = x.shape[-1]
    x2 = x.reshape(-1, C).astype(jnp.float32)
    M = x2.shape[0]

    # PyTorch nn.Linear stores weight as (out, in); the kernel consumes (in, out).
    w1 = params["w1"].astype(jnp.float32).T          # (C,   512)
    w2 = params["w2"].astype(jnp.float32).T          # (512, 512)
    w3 = params["w3"].astype(jnp.float32).T          # (512, 256)
    b1 = params["b1"].astype(jnp.float32).reshape(1, -1)
    b2 = params["b2"].astype(jnp.float32).reshape(1, -1)
    b3 = params["b3"].astype(jnp.float32).reshape(1, -1)

    D1, D2, D3 = w1.shape[1], w2.shape[1], w3.shape[1]

    # Row tile: big MXU-friendly tiles for large batches, minimal 8-sublane
    # tile otherwise.  Only rows need padding; 512/256 are already lane
    # aligned and C is consumed as a full-extent block.
    if M >= 512:
        tm = 512
    elif M >= 256:
        tm = 256
    else:
        tm = _round_up(max(M, 1), 8)
    Mp = _round_up(max(M, 1), tm)

    xp = x2 if Mp == M else jnp.pad(x2, ((0, Mp - M), (0, 0)))

    out = pl.pallas_call(
        _mlp_kernel,
        out_shape=jax.ShapeDtypeStruct((Mp, D3), jnp.float32),
        grid=(Mp // tm,),
        in_specs=[
            pl.BlockSpec((tm, C), lambda i: (i, 0)),    # x rows, tiled over grid
            pl.BlockSpec((C, D1), lambda i: (0, 0)),    # W1 resident in VMEM
            pl.BlockSpec((1, D1), lambda i: (0, 0)),    # b1 resident
            pl.BlockSpec((D1, D2), lambda i: (0, 0)),   # W2 resident
            pl.BlockSpec((1, D2), lambda i: (0, 0)),    # b2 resident
            pl.BlockSpec((D2, D3), lambda i: (0, 0)),   # W3 resident
            pl.BlockSpec((1, D3), lambda i: (0, 0)),    # b3 resident
        ],
        out_specs=pl.BlockSpec((tm, D3), lambda i: (i, 0)),
        compiler_params=pltpu.CompilerParams(
            dimension_semantics=("parallel",),
            vmem_limit_bytes=32 * 1024 * 1024,
        ),
    )(xp, w1, b1, w2, b2, w3, b3)

    if Mp != M:
        out = out[:M]
    # self.fc = nn.Identity() -> no-op.
    return out.reshape(lead_shape + (D3,))


# --------------------------------------------------------------------------
# Parameter init (PyTorch nn.Linear default: U(-1/sqrt(fan_in), 1/sqrt(fan_in)))
# --------------------------------------------------------------------------
def init_params(key, input_channels):
    def linear_init(k, out_dim, in_dim):
        k1, k2 = jax.random.split(k)
        bound = 1.0 / (in_dim ** 0.5)
        w = jax.random.uniform(k1, (out_dim, in_dim), jnp.float32, -bound, bound)
        b = jax.random.uniform(k2, (out_dim,), jnp.float32, -bound, bound)
        return w, b

    k1, k2, k3 = jax.random.split(key, 3)
    w1, b1 = linear_init(k1, 512, input_channels)
    w2, b2 = linear_init(k2, 512, 512)
    w3, b3 = linear_init(k3, 256, 512)
    return {"w1": w1, "b1": b1, "w2": w2, "b2": b2, "w3": w3, "b3": b3}


if __name__ == "__main__":
    key = jax.random.PRNGKey(0)
    pkey, xkey = jax.random.split(key)

    input_channels = 32
    batch = 8
    params = init_params(pkey, input_channels)
    x = jax.random.normal(xkey, (batch, input_channels), jnp.float32)

    fwd = jax.jit(mlp_forward)
    out = jax.block_until_ready(fwd(x, params))
    assert out.shape == (batch, 256), out.shape

    # Pure-JAX reference for correctness.
    def ref(xv, p):
        h = jnp.maximum(xv @ p["w1"].T + p["b1"], 0.0)
        h = jnp.maximum(h @ p["w2"].T + p["b2"], 0.0)
        h = jnp.maximum(h @ p["w3"].T + p["b3"], 0.0)
        return h

    expected = ref(x, params)
    assert bool(jnp.all(jnp.isfinite(out)))
    assert bool(jnp.allclose(out, expected, atol=1e-2, rtol=1e-2))
    print("KERNEL_OK")
</pallas_src>

<mosaic_0001>
module attributes {stable_mosaic.version = 11 : i64} {
  func.func @_mlp_kernel(%arg0: i32, %arg1: memref<8x32xf32, #tpu.memory_space<vmem>>, %arg2: memref<32x512xf32, #tpu.memory_space<vmem>>, %arg3: memref<1x512xf32, #tpu.memory_space<vmem>>, %arg4: memref<512x512xf32, #tpu.memory_space<vmem>>, %arg5: memref<1x512xf32, #tpu.memory_space<vmem>>, %arg6: memref<512x256xf32, #tpu.memory_space<vmem>>, %arg7: memref<1x256xf32, #tpu.memory_space<vmem>>, %arg8: memref<8x256xf32, #tpu.memory_space<vmem>>) attributes {dimension_semantics = [#tpu.dimension_semantics<parallel>], iteration_bounds = array<i64: 1>, scalar_prefetch = 0 : i64, scratch_operands = 0 : i64, tpu.core_type = #tpu.core_type<tc>, window_params = [{transform_indices = @transform_0, window_bounds = array<i64: 8, 32>}, {pipeline_mode = #tpu.pipeline_mode<synchronous>, transform_indices = @transform_1, window_bounds = array<i64: 32, 512>}, {pipeline_mode = #tpu.pipeline_mode<synchronous>, transform_indices = @transform_2, window_bounds = array<i64: 1, 512>}, {pipeline_mode = #tpu.pipeline_mode<synchronous>, transform_indices = @transform_3, window_bounds = array<i64: 512, 512>}, {pipeline_mode = #tpu.pipeline_mode<synchronous>, transform_indices = @transform_4, window_bounds = array<i64: 1, 512>}, {pipeline_mode = #tpu.pipeline_mode<synchronous>, transform_indices = @transform_5, window_bounds = array<i64: 512, 256>}, {pipeline_mode = #tpu.pipeline_mode<synchronous>, transform_indices = @transform_6, window_bounds = array<i64: 1, 256>}, {transform_indices = @transform_7, window_bounds = array<i64: 8, 256>}]} {
    %c0 = arith.constant 0 : index
    %c0_0 = arith.constant 0 : index
    %0 = vector.load %arg1[%c0, %c0_0] : memref<8x32xf32, #tpu.memory_space<vmem>>, vector<8x32xf32>
    %c0_1 = arith.constant 0 : index
    %c0_2 = arith.constant 0 : index
    %1 = vector.load %arg2[%c0_1, %c0_2] : memref<32x512xf32, #tpu.memory_space<vmem>>, vector<32x512xf32>
    %cst = arith.constant dense<0.000000e+00> : vector<8x512xf32>
    %2 = tpu.matmul %0, %1, %cst {dimension_numbers = #tpu.dot_dimension_numbers<[1], [0], [0], [1], [0, 0, 1, 1], [], []>} : vector<8x32xf32>, vector<32x512xf32>, vector<8x512xf32> -> vector<8x512xf32>
    %c0_3 = arith.constant 0 : index
    %c0_4 = arith.constant 0 : index
    %3 = vector.load %arg3[%c0_3, %c0_4] : memref<1x512xf32, #tpu.memory_space<vmem>>, vector<1x512xf32>
    %4 = vector.broadcast %3 : vector<1x512xf32> to vector<8x512xf32>
    %5 = arith.addf %2, %4 : vector<8x512xf32>
    %cst_5 = arith.constant 0.000000e+00 : f32
    %6 = vector.broadcast %cst_5 : f32 to vector<8x512xf32>
    %7 = arith.maximumf %5, %6 : vector<8x512xf32>
    %c0_6 = arith.constant 0 : index
    %c0_7 = arith.constant 0 : index
    %8 = vector.load %arg4[%c0_6, %c0_7] : memref<512x512xf32, #tpu.memory_space<vmem>>, vector<512x512xf32>
    %cst_8 = arith.constant dense<0.000000e+00> : vector<8x512xf32>
    %9 = tpu.matmul %7, %8, %cst_8 {dimension_numbers = #tpu.dot_dimension_numbers<[1], [0], [0], [1], [0, 0, 1, 1], [], []>} : vector<8x512xf32>, vector<512x512xf32>, vector<8x512xf32> -> vector<8x512xf32>
    %c0_9 = arith.constant 0 : index
    %c0_10 = arith.constant 0 : index
    %10 = vector.load %arg5[%c0_9, %c0_10] : memref<1x512xf32, #tpu.memory_space<vmem>>, vector<1x512xf32>
    %11 = vector.broadcast %10 : vector<1x512xf32> to vector<8x512xf32>
    %12 = arith.addf %9, %11 : vector<8x512xf32>
    %cst_11 = arith.constant 0.000000e+00 : f32
    %13 = vector.broadcast %cst_11 : f32 to vector<8x512xf32>
    %14 = arith.maximumf %12, %13 : vector<8x512xf32>
    %c0_12 = arith.constant 0 : index
    %c0_13 = arith.constant 0 : index
    %15 = vector.load %arg6[%c0_12, %c0_13] : memref<512x256xf32, #tpu.memory_space<vmem>>, vector<512x256xf32>
    %cst_14 = arith.constant dense<0.000000e+00> : vector<8x256xf32>
    %16 = tpu.matmul %14, %15, %cst_14 {dimension_numbers = #tpu.dot_dimension_numbers<[1], [0], [0], [1], [0, 0, 1, 1], [], []>} : vector<8x512xf32>, vector<512x256xf32>, vector<8x256xf32> -> vector<8x256xf32>
    %c0_15 = arith.constant 0 : index
    %c0_16 = arith.constant 0 : index
    %17 = vector.load %arg7[%c0_15, %c0_16] : memref<1x256xf32, #tpu.memory_space<vmem>>, vector<1x256xf32>
    %18 = vector.broadcast %17 : vector<1x256xf32> to vector<8x256xf32>
    %19 = arith.addf %16, %18 : vector<8x256xf32>
    %cst_17 = arith.constant 0.000000e+00 : f32
    %20 = vector.broadcast %cst_17 : f32 to vector<8x256xf32>
    %21 = arith.maximumf %19, %20 : vector<8x256xf32>
    %c0_18 = arith.constant 0 : index
    %c0_19 = arith.constant 0 : index
    %22 = vector.load %arg8[%c0_18, %c0_19] : memref<8x256xf32, #tpu.memory_space<vmem>>, vector<8x256xf32>
    tpu.vector_store %arg8[%c0_18, %c0_19], %21 {strides = array<i32>} : memref<8x256xf32, #tpu.memory_space<vmem>>, vector<8x256xf32>,
    return
  }
  func.func @transform_0(%arg0: i32) -> (i32, i32) {
    %c0_i32 = arith.constant 0 : i32
    %c0_i32_0 = arith.constant 0 : i32
    return %arg0, %c0_i32 : i32, i32
  }
  func.func @transform_1(%arg0: i32) -> (i32, i32) {
    %c0_i32 = arith.constant 0 : i32
    %c0_i32_0 = arith.constant 0 : i32
    %c0_i32_1 = arith.constant 0 : i32
    return %c0_i32, %c0_i32_0 : i32, i32
  }
  func.func @transform_2(%arg0: i32) -> (i32, i32) {
    %c0_i32 = arith.constant 0 : i32
    %c0_i32_0 = arith.constant 0 : i32
    %c0_i32_1 = arith.constant 0 : i32
    return %c0_i32, %c0_i32_0 : i32, i32
  }
  func.func @transform_3(%arg0: i32) -> (i32, i32) {
    %c0_i32 = arith.constant 0 : i32
    %c0_i32_0 = arith.constant 0 : i32
    %c0_i32_1 = arith.constant 0 : i32
    return %c0_i32, %c0_i32_0 : i32, i32
  }
  func.func @transform_4(%arg0: i32) -> (i32, i32) {
    %c0_i32 = arith.constant 0 : i32
    %c0_i32_0 = arith.constant 0 : i32
    %c0_i32_1 = arith.constant 0 : i32
    return %c0_i32, %c0_i32_0 : i32, i32
  }
  func.func @transform_5(%arg0: i32) -> (i32, i32) {
    %c0_i32 = arith.constant 0 : i32
    %c0_i32_0 = arith.constant 0 : i32
    %c0_i32_1 = arith.constant 0 : i32
    return %c0_i32, %c0_i32_0 : i32, i32
  }
  func.func @transform_6(%arg0: i32) -> (i32, i32) {
    %c0_i32 = arith.constant 0 : i32
    %c0_i32_0 = arith.constant 0 : i32
    %c0_i32_1 = arith.constant 0 : i32
    return %c0_i32, %c0_i32_0 : i32, i32
  }
  func.func @transform_7(%arg0: i32) -> (i32, i32) {
    %c0_i32 = arith.constant 0 : i32
    %c0_i32_0 = arith.constant 0 : i32
    return %arg0, %c0_i32 : i32, i32
  }
}

</mosaic_0001>

<llo_original>
// kernel: mlp_forward.1
$region0: #{mlp_forward.1}
  #allocation0 [shape = 'u32[]', space=smem, size = 0x4, offset = 0x4, fixed_abs, tag = 'smem constant byte address 0x4 - core index']
  #allocation1 [shape = 'u32[72,128]{1,0:T(1,128)}', space=vmem, size = 0x9000, scoped, tag = 'internal scratch']
  %s0 = inlined_call_operand.vmem [shape: f32[8,32], index: 0, kind: input, shape index: {}]
  %s1 = inlined_call_operand.vmem [shape: f32[32,512], index: 1, kind: input, shape index: {}]
  %s2 = inlined_call_operand.vmem [shape: f32[1,512], index: 2, kind: input, shape index: {}]
  %s3 = inlined_call_operand.vmem [shape: f32[512,512], index: 3, kind: input, shape index: {}]
  %s4 = inlined_call_operand.vmem [shape: f32[1,512], index: 4, kind: input, shape index: {}]
  %s5 = inlined_call_operand.vmem [shape: f32[512,256], index: 5, kind: input, shape index: {}]
  %s6 = inlined_call_operand.vmem [shape: f32[1,256], index: 6, kind: input, shape index: {}]
  %s7 = inlined_call_operand.hbm [shape: f32[8,256], index: 7, kind: output, shape index: {}]
  %s8 = sld [smem:[#allocation0]]
  $region38: #{mlp_forward.1} parent=0
    _
  %s10 = ssub.s32 1, %s8
  %s11 = scalar_select 0, %s10, %s8
  $region1: #{mlp_forward.1} parent=0
    #allocation2 [shape = 'u8[8192]{0}', space=vmem, size = 0x2000, scoped, tag = 'output window, operand 0, single buffered']
    #allocation3 [shape = 's32[1]{0}', space=sflag, size = 0x4, scoped, tag = 'scoped memory for mlp_forward.1']
    %12 = vsyncpa [#allocation3], 0
    // Predicated region
    $region2: #{mlp_forward.1} parent=1 // pred_check
      _
    $region3: #{mlp_forward.1} parent=1 // pred_check_branch
      %14 = sbr.rel (0) target = $region5
    $region4: #{mlp_forward.1} parent=1 // pred_region
      _
    $region5: #{mlp_forward.1} parent=1 // pred_fallthru
      _
    // Predicated region
    $region6: #{mlp_forward.1} parent=1 // pred_check
      _
    $region7: #{mlp_forward.1} parent=1 // pred_check_branch
      %16 = sbr.rel (0) target = $region9
    $region8: #{mlp_forward.1} parent=1 // pred_region
      _
    $region9: #{mlp_forward.1} parent=1 // pred_fallthru
      _
    // Predicated region
    $region10: #{mlp_forward.1} parent=1 // pred_check
      _
    $region11: #{mlp_forward.1} parent=1 // pred_check_branch
      %18 = sbr.rel (0) target = $region13
    $region12: #{mlp_forward.1} parent=1 // pred_region
      _
    $region13: #{mlp_forward.1} parent=1 // pred_fallthru
      _
    // Predicated region
    $region14: #{mlp_forward.1} parent=1 // pred_check
      _
    $region15: #{mlp_forward.1} parent=1 // pred_check_branch
      %20 = sbr.rel (0) target = $region17
    $region16: #{mlp_forward.1} parent=1 // pred_region
      _
    $region17: #{mlp_forward.1} parent=1 // pred_fallthru
      _
    // Predicated region
    $region18: #{mlp_forward.1} parent=1 // pred_check
      _
    $region19: #{mlp_forward.1} parent=1 // pred_check_branch
      %22 = sbr.rel (0) target = $region21
    $region20: #{mlp_forward.1} parent=1 // pred_region
      _
    $region21: #{mlp_forward.1} parent=1 // pred_fallthru
      _
    // Predicated region
    $region22: #{mlp_forward.1} parent=1 // pred_check
      _
    $region23: #{mlp_forward.1} parent=1 // pred_check_branch
      %24 = sbr.rel (0) target = $region25
    $region24: #{mlp_forward.1} parent=1 // pred_region
      _
    $region25: #{mlp_forward.1} parent=1 // pred_fallthru
      _
    // Predicated region
    $region26: #{mlp_forward.1} parent=1 // pred_check
      _
    $region27: #{mlp_forward.1} parent=1 // pred_check_branch
      %26 = sbr.rel (0) target = $region29
    $region28: #{mlp_forward.1} parent=1 // pred_region
      _
    $region29: #{mlp_forward.1} parent=1 // pred_fallthru
      _
    %v27 = vld [vmem:[%s0] sm:$0xff]
    %v28 = vld [vmem:[%s1] sm:$0xff]
    %v29 = vld [vmem:[%s1 + $0x8] sm:$0xff]
    %v30 = vld [vmem:[%s1 + $0x10] sm:$0xff]
    %v31 = vld [vmem:[%s1 + $0x18] sm:$0xff]
    %v32 = vld [vmem:[%s1 + $0x20] sm:$0xff]
    %v33 = vld [vmem:[%s1 + $0x28] sm:$0xff]
    %v34 = vld [vmem:[%s1 + $0x30] sm:$0xff]
    %v35 = vld [vmem:[%s1 + $0x38] sm:$0xff]
    %v36 = vld [vmem:[%s1 + $0x40] sm:$0xff]
    %v37 = vld [vmem:[%s1 + $0x48] sm:$0xff]
    %v38 = vld [vmem:[%s1 + $0x50] sm:$0xff]
    %v39 = vld [vmem:[%s1 + $0x58] sm:$0xff]
    %v40 = vld [vmem:[%s1 + $0x60] sm:$0xff]
    %v41 = vld [vmem:[%s1 + $0x68] sm:$0xff]
    %v42 = vld [vmem:[%s1 + $0x70] sm:$0xff]
    %v43 = vld [vmem:[%s1 + $0x78] sm:$0xff]
    %v44 = vld [vmem:[%s2] sm:$0xf]
    %v46 = vperm.slane %v44, 0
    %v47 = vperm.slane %v44, 1
    %v48 = vperm.slane %v44, 2
    %v49 = vperm.slane %v44, 3
    %vm54 = vcmask 261120
    %v56 = vsel %vm54, %v27, 0
    %58 = vmatpush.msra.mxu0 0.0
    %59 = vmatpush.msra.mxu0 0.0
    %60 = vmatpush.msra.mxu0 0.0
    %61 = vmatpush.msra.mxu0 0.0
    %62 = vmatpush.msra.mxu0 0.0
    %63 = vmatpush.msra.mxu0 0.0
    %64 = vmatpush.msra.mxu0 0.0
    %65 = vmatpush.msra.mxu0 0.0
    %66 = vmatpush.msra.mxu0 0.0
    %67 = vmatpush.msra.mxu0 0.0
    %68 = vmatpush.msra.mxu0 0.0
    %69 = vmatpush.msra.mxu0 0.0
    %70 = vmatpush.msra.mxu0 %v40
    %71 = vmatpush.msra.mxu0 %v36
    %72 = vmatpush.msra.mxu0 %v32
    %73 = vmatpush.msra.mxu0 %v28
    %74 = vmatmul.f32.gmra.mxu0 %v56
    %v75 = vpop.f32.mrf.mxu0
    %v76 = vadd.f32 %v46, %v75
    %77 = vdwg.mxu0
    %78 = vmatpush.msra.mxu0 0.0
    %79 = vmatpush.msra.mxu0 0.0
    %80 = vmatpush.msra.mxu0 0.0
    %81 = vmatpush.msra.mxu0 0.0
    %82 = vmatpush.msra.mxu0 0.0
    %83 = vmatpush.msra.mxu0 0.0
    %84 = vmatpush.msra.mxu0 0.0
    %85 = vmatpush.msra.mxu0 0.0
    %86 = vmatpush.msra.mxu0 0.0
    %87 = vmatpush.msra.mxu0 0.0
    %88 = vmatpush.msra.mxu0 0.0
    %89 = vmatpush.msra.mxu0 0.0
    %90 = vmatpush.msra.mxu0 %v41
    %91 = vmatpush.msra.mxu0 %v37
    %92 = vmatpush.msra.mxu0 %v33
    %93 = vmatpush.msra.mxu0 %v29
    %94 = vmatmul.f32.gmra.mxu0 %v56
    %v95 = vpop.f32.mrf.mxu0
    %v96 = vadd.f32 %v47, %v95
    %97 = vdwg.mxu0
    %98 = vmatpush.msra.mxu0 0.0
    %99 = vmatpush.msra.mxu0 0.0
    %100 = vmatpush.msra.mxu0 0.0
    %101 = vmatpush.msra.mxu0 0.0
    %102 = vmatpush.msra.mxu0 0.0
    %103 = vmatpush.msra.mxu0 0.0
    %104 = vmatpush.msra.mxu0 0.0
    %105 = vmatpush.msra.mxu0 0.0
    %106 = vmatpush.msra.mxu0 0.0
    %107 = vmatpush.msra.mxu0 0.0
    %108 = vmatpush.msra.mxu0 0.0
    %109 = vmatpush.msra.mxu0 0.0
    %110 = vmatpush.msra.mxu0 %v42
    %111 = vmatpush.msra.mxu0 %v38
    %112 = vmatpush.msra.mxu0 %v34
    %113 = vmatpush.msra.mxu0 %v30
    %114 = vmatmul.f32.gmra.mxu0 %v56
    %v115 = vpop.f32.mrf.mxu0
    %v116 = vadd.f32 %v48, %v115
    %117 = vdwg.mxu0
    %118 = vmatpush.msra.mxu0 0.0
    %119 = vmatpush.msra.mxu0 0.0
    %120 = vmatpush.msra.mxu0 0.0
    %121 = vmatpush.msra.mxu0 0.0
    %122 = vmatpush.msra.mxu0 0.0
    %123 = vmatpush.msra.mxu0 0.0
    %124 = vmatpush.msra.mxu0 0.0
    %125 = vmatpush.msra.mxu0 0.0
    %126 = vmatpush.msra.mxu0 0.0
    %127 = vmatpush.msra.mxu0 0.0
    %128 = vmatpush.msra.mxu0 0.0
    %129 = vmatpush.msra.mxu0 0.0
    %130 = vmatpush.msra.mxu0 %v43
    %131 = vmatpush.msra.mxu0 %v39
    %132 = vmatpush.msra.mxu0 %v35
    %133 = vmatpush.msra.mxu0 %v31
    %134 = vmatmul.f32.gmra.mxu0 %v56
    %v135 = vpop.f32.mrf.mxu0
    %v136 = vadd.f32 %v49, %v135
    %137 = vdwg.mxu0
    %v138 = vmax.f32 %v76, 0.0
    %v139 = vmax.f32 %v96, 0.0
    %v140 = vmax.f32 %v116, 0.0
    %v141 = vmax.f32 %v136, 0.0
    %v142 = vld [vmem:[%s3] sm:$0xff]
    %v143 = vld [vmem:[%s3 + $0x8] sm:$0xff]
    %v144 = vld [vmem:[%s3 + $0x10] sm:$0xff]
    %v145 = vld [vmem:[%s3 + $0x18] sm:$0xff]
    %v146 = vld [vmem:[%s3 + $0x20] sm:$0xff]
    %v147 = vld [vmem:[%s3 + $0x28] sm:$0xff]
    %v148 = vld [vmem:[%s3 + $0x30] sm:$0xff]
    %v149 = vld [vmem:[%s3 + $0x38] sm:$0xff]
    %v150 = vld [vmem:[%s3 + $0x40] sm:$0xff]
    %v151 = vld [vmem:[%s3 + $0x48] sm:$0xff]
    %v152 = vld [vmem:[%s3 + $0x50] sm:$0xff]
    %v153 = vld [vmem:[%s3 + $0x58] sm:$0xff]
    %v154 = vld [vmem:[%s3 + $0x60] sm:$0xff]
    %v155 = vld [vmem:[%s3 + $0x68] sm:$0xff]
    %v156 = vld [vmem:[%s3 + $0x70] sm:$0xff]
    %v157 = vld [vmem:[%s3 + $0x78] sm:$0xff]
    %v158 = vld [vmem:[%s3 + $0x80] sm:$0xff]
    %v159 = vld [vmem:[%s3 + $0x88] sm:$0xff]
    %v160 = vld [vmem:[%s3 + $0x90] sm:$0xff]
    %v161 = vld [vmem:[%s3 + $0x98] sm:$0xff]
    %v162 = vld [vmem:[%s3 + $0xa0] sm:$0xff]
    %v163 = vld [vmem:[%s3 + $0xa8] sm:$0xff]
    %v164 = vld [vmem:[%s3 + $0xb0] sm:$0xff]
    %v165 = vld [vmem:[%s3 + $0xb8] sm:$0xff]
    %v166 = vld [vmem:[%s3 + $0xc0] sm:$0xff]
    %v167 = vld [vmem:[%s3 + $0xc8] sm:$0xff]
    %v168 = vld [vmem:[%s3 + $0xd0] sm:$0xff]
    %v169 = vld [vmem:[%s3 + $0xd8] sm:$0xff]
    %v170 = vld [vmem:[%s3 + $0xe0] sm:$0xff]
    %v171 = vld [vmem:[%s3 + $0xe8] sm:$0xff]
    %v172 = vld [vmem:[%s3 + $0xf0] sm:$0xff]
    %v173 = vld [vmem:[%s3 + $0xf8] sm:$0xff]
    %v174 = vld [vmem:[%s3 + $0x100] sm:$0xff]
    %v175 = vld [vmem:[%s3 + $0x108] sm:$0xff]
    %v176 = vld [vmem:[%s3 + $0x110] sm:$0xff]
    %v177 = vld [vmem:[%s3 + $0x118] sm:$0xff]
    %v178 = vld [vmem:[%s3 + $0x120] sm:$0xff]
    %v179 = vld [vmem:[%s3 + $0x128] sm:$0xff]
    %v180 = vld [vmem:[%s3 + $0x130] sm:$0xff]
    %v181 = vld [vmem:[%s3 + $0x138] sm:$0xff]
    %v182 = vld [vmem:[%s3 + $0x140] sm:$0xff]
    %v183 = vld [vmem:[%s3 + $0x148] sm:$0xff]
    %v184 = vld [vmem:[%s3 + $0x150] sm:$0xff]
    %v185 = vld [vmem:[%s3 + $0x158] sm:$0xff]
    %v186 = vld [vmem:[%s3 + $0x160] sm:$0xff]
    %v187 = vld [vmem:[%s3 + $0x168] sm:$0xff]
    %v188 = vld [vmem:[%s3 + $0x170] sm:$0xff]
    %v189 = vld [vmem:[%s3 + $0x178] sm:$0xff]
    %v190 = vld [vmem:[%s3 + $0x180] sm:$0xff]
    %v191 = vld [vmem:[%s3 + $0x188] sm:$0xff]
    %v192 = vld [vmem:[%s3 + $0x190] sm:$0xff]
    %v193 = vld [vmem:[%s3 + $0x198] sm:$0xff]
    %v194 = vld [vmem:[%s3 + $0x1a0] sm:$0xff]
    %v195 = vld [vmem:[%s3 + $0x1a8] sm:$0xff]
    %v196 = vld [vmem:[%s3 + $0x1b0] sm:$0xff]
    %v197 = vld [vmem:[%s3 + $0x1b8] sm:$0xff]
    %v198 = vld [vmem:[%s3 + $0x1c0] sm:$0xff]
    %v199 = vld [vmem:[%s3 + $0x1c8] sm:$0xff]
    %v200 = vld [vmem:[%s3 + $0x1d0] sm:$0xff]
    %v201 = vld [vmem:[%s3 + $0x1d8] sm:$0xff]
    %v202 = vld [vmem:[%s3 + $0x1e0] sm:$0xff]
    %v203 = vld [vmem:[%s3 + $0x1e8] sm:$0xff]
    %v204 = vld [vmem:[%s3 + $0x1f0] sm:$0xff]
    %v205 = vld [vmem:[%s3 + $0x1f8] sm:$0xff]
    %v206 = vld [vmem:[%s3 + $0x200] sm:$0xff]
    %v207 = vld [vmem:[%s3 + $0x208] sm:$0xff]
    %v208 = vld [vmem:[%s3 + $0x210] sm:$0xff]
    %v209 = vld [vmem:[%s3 + $0x218] sm:$0xff]
    %v210 = vld [vmem:[%s3 + $0x220] sm:$0xff]
    %v211 = vld [vmem:[%s3 + $0x228] sm:$0xff]
    %v212 = vld [vmem:[%s3 + $0x230] sm:$0xff]
    %v213 = vld [vmem:[%s3 + $0x238] sm:$0xff]
    %v214 = vld [vmem:[%s3 + $0x240] sm:$0xff]
    %v215 = vld [vmem:[%s3 + $0x248] sm:$0xff]
    %v216 = vld [vmem:[%s3 + $0x250] sm:$0xff]
    %v217 = vld [vmem:[%s3 + $0x258] sm:$0xff]
    %v218 = vld [vmem:[%s3 + $0x260] sm:$0xff]
    %v219 = vld [vmem:[%s3 + $0x268] sm:$0xff]
    %v220 = vld [vmem:[%s3 + $0x270] sm:$0xff]
    %v221 = vld [vmem:[%s3 + $0x278] sm:$0xff]
    %v222 = vld [vmem:[%s3 + $0x280] sm:$0xff]
    %v223 = vld [vmem:[%s3 + $0x288] sm:$0xff]
    %v224 = vld [vmem:[%s3 + $0x290] sm:$0xff]
    %v225 = vld [vmem:[%s3 + $0x298] sm:$0xff]
    %v226 = vld [vmem:[%s3 + $0x2a0] sm:$0xff]
    %v227 = vld [vmem:[%s3 + $0x2a8] sm:$0xff]
    %v228 = vld [vmem:[%s3 + $0x2b0] sm:$0xff]
    %v229 = vld [vmem:[%s3 + $0x2b8] sm:$0xff]
    %v230 = vld [vmem:[%s3 + $0x2c0] sm:$0xff]
    %v231 = vld [vmem:[%s3 + $0x2c8] sm:$0xff]
    %v232 = vld [vmem:[%s3 + $0x2d0] sm:$0xff]
    %v233 = vld [vmem:[%s3 + $0x2d8] sm:$0xff]
    %v234 = vld [vmem:[%s3 + $0x2e0] sm:$0xff]
    %v235 = vld [vmem:[%s3 + $0x2e8] sm:$0xff]
    %v236 = vld [vmem:[%s3 + $0x2f0] sm:$0xff]
    %v237 = vld [vmem:[%s3 + $0x2f8] sm:$0xff]
    %v238 = vld [vmem:[%s3 + $0x300] sm:$0xff]
    %v239 = vld [vmem:[%s3 + $0x308] sm:$0xff]
    %v240 = vld [vmem:[%s3 + $0x310] sm:$0xff]
    %v241 = vld [vmem:[%s3 + $0x318] sm:$0xff]
    %v242 = vld [vmem:[%s3 + $0x320] sm:$0xff]
    %v243 = vld [vmem:[%s3 + $0x328] sm:$0xff]
    %v244 = vld [vmem:[%s3 + $0x330] sm:$0xff]
    %v245 = vld [vmem:[%s3 + $0x338] sm:$0xff]
    %v246 = vld [vmem:[%s3 + $0x340] sm:$0xff]
    %v247 = vld [vmem:[%s3 + $0x348] sm:$0xff]
    %v248 = vld [vmem:[%s3 + $0x350] sm:$0xff]
    %v249 = vld [vmem:[%s3 + $0x358] sm:$0xff]
    %v250 = vld [vmem:[%s3 + $0x360] sm:$0xff]
    %v251 = vld [vmem:[%s3 + $0x368] sm:$0xff]
    %v252 = vld [vmem:[%s3 + $0x370] sm:$0xff]
    %v253 = vld [vmem:[%s3 + $0x378] sm:$0xff]
    %v254 = vld [vmem:[%s3 + $0x380] sm:$0xff]
    %v255 = vld [vmem:[%s3 + $0x388] sm:$0xff]
    %v256 = vld [vmem:[%s3 + $0x390] sm:$0xff]
    %v257 = vld [vmem:[%s3 + $0x398] sm:$0xff]
    %v258 = vld [vmem:[%s3 + $0x3a0] sm:$0xff]
    %v259 = vld [vmem:[%s3 + $0x3a8] sm:$0xff]
    %v260 = vld [vmem:[%s3 + $0x3b0] sm:$0xff]
    %v261 = vld [vmem:[%s3 + $0x3b8] sm:$0xff]
    %v262 = vld [vmem:[%s3 + $0x3c0] sm:$0xff]
    %v263 = vld [vmem:[%s3 + $0x3c8] sm:$0xff]
    %v264 = vld [vmem:[%s3 + $0x3d0] sm:$0xff]
    %v265 = vld [vmem:[%s3 + $0x3d8] sm:$0xff]
    %v266 = vld [vmem:[%s3 + $0x3e0] sm:$0xff]
    %v267 = vld [vmem:[%s3 + $0x3e8] sm:$0xff]
    %v268 = vld [vmem:[%s3 + $0x3f0] sm:$0xff]
    %v269 = vld [vmem:[%s3 + $0x3f8] sm:$0xff]
    %v270 = vld [vmem:[%s3 + $0x400] sm:$0xff]
    %v271 = vld [vmem:[%s3 + $0x408] sm:$0xff]
    %v272 = vld [vmem:[%s3 + $0x410] sm:$0xff]
    %v273 = vld [vmem:[%s3 + $0x418] sm:$0xff]
    %v274 = vld [vmem:[%s3 + $0x420] sm:$0xff]
    %v275 = vld [vmem:[%s3 + $0x428] sm:$0xff]
    %v276 = vld [vmem:[%s3 + $0x430] sm:$0xff]
    %v277 = vld [vmem:[%s3 + $0x438] sm:$0xff]
    %v278 = vld [vmem:[%s3 + $0x440] sm:$0xff]
    %v279 = vld [vmem:[%s3 + $0x448] sm:$0xff]
    %v280 = vld [vmem:[%s3 + $0x450] sm:$0xff]
    %v281 = vld [vmem:[%s3 + $0x458] sm:$0xff]
    %v282 = vld [vmem:[%s3 + $0x460] sm:$0xff]
    %v283 = vld [vmem:[%s3 + $0x468] sm:$0xff]
    %v284 = vld [vmem:[%s3 + $0x470] sm:$0xff]
    %v285 = vld [vmem:[%s3 + $0x478] sm:$0xff]
    %v286 = vld [vmem:[%s3 + $0x480] sm:$0xff]
    %v287 = vld [vmem:[%s3 + $0x488] sm:$0xff]
    %v288 = vld [vmem:[%s3 + $0x490] sm:$0xff]
    %v289 = vld [vmem:[%s3 + $0x498] sm:$0xff]
    %v290 = vld [vmem:[%s3 + $0x4a0] sm:$0xff]
    %v291 = vld [vmem:[%s3 + $0x4a8] sm:$0xff]
    %v292 = vld [vmem:[%s3 + $0x4b0] sm:$0xff]
    %v293 = vld [vmem:[%s3 + $0x4b8] sm:$0xff]
    %v294 = vld [vmem:[%s3 + $0x4c0] sm:$0xff]
    %v295 = vld [vmem:[%s3 + $0x4c8] sm:$0xff]
    %v296 = vld [vmem:[%s3 + $0x4d0] sm:$0xff]
    %v297 = vld [vmem:[%s3 + $0x4d8] sm:$0xff]
    %v298 = vld [vmem:[%s3 + $0x4e0] sm:$0xff]
    %v299 = vld [vmem:[%s3 + $0x4e8] sm:$0xff]
    %v300 = vld [vmem:[%s3 + $0x4f0] sm:$0xff]
    %v301 = vld [vmem:[%s3 + $0x4f8] sm:$0xff]
    %v302 = vld [vmem:[%s3 + $0x500] sm:$0xff]
    %v303 = vld [vmem:[%s3 + $0x508] sm:$0xff]
    %v304 = vld [vmem:[%s3 + $0x510] sm:$0xff]
    %v305 = vld [vmem:[%s3 + $0x518] sm:$0xff]
    %v306 = vld [vmem:[%s3 + $0x520] sm:$0xff]
    %v307 = vld [vmem:[%s3 + $0x528] sm:$0xff]
    %v308 = vld [vmem:[%s3 + $0x530] sm:$0xff]
    %v309 = vld [vmem:[%s3 + $0x538] sm:$0xff]
    %v310 = vld [vmem:[%s3 + $0x540] sm:$0xff]
    %v311 = vld [vmem:[%s3 + $0x548] sm:$0xff]
    %v312 = vld [vmem:[%s3 + $0x550] sm:$0xff]
    %v313 = vld [vmem:[%s3 + $0x558] sm:$0xff]
    %v314 = vld [vmem:[%s3 + $0x560] sm:$0xff]
    %v315 = vld [vmem:[%s3 + $0x568] sm:$0xff]
    %v316 = vld [vmem:[%s3 + $0x570] sm:$0xff]
    %v317 = vld [vmem:[%s3 + $0x578] sm:$0xff]
    %v318 = vld [vmem:[%s3 + $0x580] sm:$0xff]
    %v319 = vld [vmem:[%s3 + $0x588] sm:$0xff]
    %v320 = vld [vmem:[%s3 + $0x590] sm:$0xff]
    %v321 = vld [vmem:[%s3 + $0x598] sm:$0xff]
    %v322 = vld [vmem:[%s3 + $0x5a0] sm:$0xff]
    %v323 = vld [vmem:[%s3 + $0x5a8] sm:$0xff]
    %v324 = vld [vmem:[%s3 + $0x5b0] sm:$0xff]
    %v325 = vld [vmem:[%s3 + $0x5b8] sm:$0xff]
    %v326 = vld [vmem:[%s3 + $0x5c0] sm:$0xff]
    %v327 = vld [vmem:[%s3 + $0x5c8] sm:$0xff]
    %v328 = vld [vmem:[%s3 + $0x5d0] sm:$0xff]
    %v329 = vld [vmem:[%s3 + $0x5d8] sm:$0xff]
    %v330 = vld [vmem:[%s3 + $0x5e0] sm:$0xff]
    %v331 = vld [vmem:[%s3 + $0x5e8] sm:$0xff]
    %v332 = vld [vmem:[%s3 + $0x5f0] sm:$0xff]
    %v333 = vld [vmem:[%s3 + $0x5f8] sm:$0xff]
    %v334 = vld [vmem:[%s3 + $0x600] sm:$0xff]
    %v335 = vld [vmem:[%s3 + $0x608] sm:$0xff]
    %v336 = vld [vmem:[%s3 + $0x610] sm:$0xff]
    %v337 = vld [vmem:[%s3 + $0x618] sm:$0xff]
    %v338 = vld [vmem:[%s3 + $0x620] sm:$0xff]
    %v339 = vld [vmem:[%s3 + $0x628] sm:$0xff]
    %v340 = vld [vmem:[%s3 + $0x630] sm:$0xff]
    %v341 = vld [vmem:[%s3 + $0x638] sm:$0xff]
    %v342 = vld [vmem:[%s3 + $0x640] sm:$0xff]
    %v343 = vld [vmem:[%s3 + $0x648] sm:$0xff]
    %v344 = vld [vmem:[%s3 + $0x650] sm:$0xff]
    %v345 = vld [vmem:[%s3 + $0x658] sm:$0xff]
    %v346 = vld [vmem:[%s3 + $0x660] sm:$0xff]
    %v347 = vld [vmem:[%s3 + $0x668] sm:$0xff]
    %v348 = vld [vmem:[%s3 + $0x670] sm:$0xff]
    %v349 = vld [vmem:[%s3 + $0x678] sm:$0xff]
    %v350 = vld [vmem:[%s3 + $0x680] sm:$0xff]
    %v351 = vld [vmem:[%s3 + $0x688] sm:$0xff]
    %v352 = vld [vmem:[%s3 + $0x690] sm:$0xff]
    %v353 = vld [vmem:[%s3 + $0x698] sm:$0xff]
    %v354 = vld [vmem:[%s3 + $0x6a0] sm:$0xff]
    %v355 = vld [vmem:[%s3 + $0x6a8] sm:$0xff]
    %v356 = vld [vmem:[%s3 + $0x6b0] sm:$0xff]
    %v357 = vld [vmem:[%s3 + $0x6b8] sm:$0xff]
    %v358 = vld [vmem:[%s3 + $0x6c0] sm:$0xff]
    %v359 = vld [vmem:[%s3 + $0x6c8] sm:$0xff]
    %v360 = vld [vmem:[%s3 + $0x6d0] sm:$0xff]
    %v361 = vld [vmem:[%s3 + $0x6d8] sm:$0xff]
    %v362 = vld [vmem:[%s3 + $0x6e0] sm:$0xff]
    %v363 = vld [vmem:[%s3 + $0x6e8] sm:$0xff]
    %v364 = vld [vmem:[%s3 + $0x6f0] sm:$0xff]
    %v365 = vld [vmem:[%s3 + $0x6f8] sm:$0xff]
    %v366 = vld [vmem:[%s3 + $0x700] sm:$0xff]
    %v367 = vld [vmem:[%s3 + $0x708] sm:$0xff]
    %v368 = vld [vmem:[%s3 + $0x710] sm:$0xff]
    %v369 = vld [vmem:[%s3 + $0x718] sm:$0xff]
    %v370 = vld [vmem:[%s3 + $0x720] sm:$0xff]
    %v371 = vld [vmem:[%s3 + $0x728] sm:$0xff]
    %v372 = vld [vmem:[%s3 + $0x730] sm:$0xff]
    %v373 = vld [vmem:[%s3 + $0x738] sm:$0xff]
    %v374 = vld [vmem:[%s3 + $0x740] sm:$0xff]
    %v375 = vld [vmem:[%s3 + $0x748] sm:$0xff]
    %v376 = vld [vmem:[%s3 + $0x750] sm:$0xff]
    %v377 = vld [vmem:[%s3 + $0x758] sm:$0xff]
    %v378 = vld [vmem:[%s3 + $0x760] sm:$0xff]
    %v379 = vld [vmem:[%s3 + $0x768] sm:$0xff]
    %v380 = vld [vmem:[%s3 + $0x770] sm:$0xff]
    %v381 = vld [vmem:[%s3 + $0x778] sm:$0xff]
    %v382 = vld [vmem:[%s3 + $0x780] sm:$0xff]
    %v383 = vld [vmem:[%s3 + $0x788] sm:$0xff]
    %v384 = vld [vmem:[%s3 + $0x790] sm:$0xff]
    %v385 = vld [vmem:[%s3 + $0x798] sm:$0xff]
    %v386 = vld [vmem:[%s3 + $0x7a0] sm:$0xff]
    %v387 = vld [vmem:[%s3 + $0x7a8] sm:$0xff]
    %v388 = vld [vmem:[%s3 + $0x7b0] sm:$0xff]
    %v389 = vld [vmem:[%s3 + $0x7b8] sm:$0xff]
    %v390 = vld [vmem:[%s3 + $0x7c0] sm:$0xff]
    %v391 = vld [vmem:[%s3 + $0x7c8] sm:$0xff]
    %v392 = vld [vmem:[%s3 + $0x7d0] sm:$0xff]
    %v393 = vld [vmem:[%s3 + $0x7d8] sm:$0xff]
    %v394 = vld [vmem:[%s3 + $0x7e0] sm:$0xff]
    %v395 = vld [vmem:[%s3 + $0x7e8] sm:$0xff]
    %v396 = vld [vmem:[%s3 + $0x7f0] sm:$0xff]
    %v397 = vld [vmem:[%s3 + $0x7f8] sm:$0xff]
    %v398 = vld [vmem:[%s4] sm:$0xf]
    %v400 = vperm.slane %v398, 0
    %v401 = vperm.slane %v398, 1
    %v402 = vperm.slane %v398, 2
    %v403 = vperm.slane %v398, 3
    %408 = vmatpush.msra.mxu0 %v202
    %409 = vmatpush.msra.mxu0 %v198
    %410 = vmatpush.msra.mxu0 %v194
    %411 = vmatpush.msra.mxu0 %v190
    %412 = vmatpush.msra.mxu0 %v186
    %413 = vmatpush.msra.mxu0 %v182
    %414 = vmatpush.msra.mxu0 %v178
    %415 = vmatpush.msra.mxu0 %v174
    %416 = vmatpush.msra.mxu0 %v170
    %417 = vmatpush.msra.mxu0 %v166
    %418 = vmatpush.msra.mxu0 %v162
    %419 = vmatpush.msra.mxu0 %v158
    %420 = vmatpush.msra.mxu0 %v154
    %421 = vmatpush.msra.mxu0 %v150
    %422 = vmatpush.msra.mxu0 %v146
    %423 = vmatpush.msra.mxu0 %v142
    %424 = vmatmul.f32.gmra.mxu0 %v138
    %v425 = vpop.f32.mrf.mxu0
    %v426 = vadd.f32 %v400, %v425
    %427 = vdwg.mxu0
    %428 = vmatpush.msra.mxu0 %v266
    %429 = vmatpush.msra.mxu0 %v262
    %430 = vmatpush.msra.mxu0 %v258
    %431 = vmatpush.msra.mxu0 %v254
    %432 = vmatpush.msra.mxu0 %v250
    %433 = vmatpush.msra.mxu0 %v246
    %434 = vmatpush.msra.mxu0 %v242
    %435 = vmatpush.msra.mxu0 %v238
    %436 = vmatpush.msra.mxu0 %v234
    %437 = vmatpush.msra.mxu0 %v230
    %438 = vmatpush.msra.mxu0 %v226
    %439 = vmatpush.msra.mxu0 %v222
    %440 = vmatpush.msra.mxu0 %v218
    %441 = vmatpush.msra.mxu0 %v214
    %442 = vmatpush.msra.mxu0 %v210
    %443 = vmatpush.msra.mxu0 %v206
    %444 = vmatmul.f32.gmra.mxu0 %v139
    %v445 = vpop.f32.mrf.mxu0
    %v446 = vadd.f32 %v426, %v445
    %447 = vdwg.mxu0
    %448 = vmatpush.msra.mxu0 %v330
    %449 = vmatpush.msra.mxu0 %v326
    %450 = vmatpush.msra.mxu0 %v322
    %451 = vmatpush.msra.mxu0 %v318
    %452 = vmatpush.msra.mxu0 %v314
    %453 = vmatpush.msra.mxu0 %v310
    %454 = vmatpush.msra.mxu0 %v306
    %455 = vmatpush.msra.mxu0 %v302
    %456 = vmatpush.msra.mxu0 %v298
    %457 = vmatpush.msra.mxu0 %v294
    %458 = vmatpush.msra.mxu0 %v290
    %459 = vmatpush.msra.mxu0 %v286
    %460 = vmatpush.msra.mxu0 %v282
    %461 = vmatpush.msra.mxu0 %v278
    %462 = vmatpush.msra.mxu0 %v274
    %463 = vmatpush.msra.mxu0 %v270
    %464 = vmatmul.f32.gmra.mxu0 %v140
    %v465 = vpop.f32.mrf.mxu0
    %v466 = vadd.f32 %v446, %v465
    %467 = vdwg.mxu0
    %468 = vmatpush.msra.mxu0 %v394
    %469 = vmatpush.msra.mxu0 %v390
    %470 = vmatpush.msra.mxu0 %v386
    %471 = vmatpush.msra.mxu0 %v382
    %472 = vmatpush.msra.mxu0 %v378
    %473 = vmatpush.msra.mxu0 %v374
    %474 = vmatpush.msra.mxu0 %v370
    %475 = vmatpush.msra.mxu0 %v366
    %476 = vmatpush.msra.mxu0 %v362
    %477 = vmatpush.msra.mxu0 %v358
    %478 = vmatpush.msra.mxu0 %v354
    %479 = vmatpush.msra.mxu0 %v350
    %480 = vmatpush.msra.mxu0 %v346
    %481 = vmatpush.msra.mxu0 %v342
    %482 = vmatpush.msra.mxu0 %v338
    %483 = vmatpush.msra.mxu0 %v334
    %484 = vmatmul.f32.gmra.mxu0 %v141
    %v485 = vpop.f32.mrf.mxu0
    %v486 = vadd.f32 %v466, %v485
    %487 = vdwg.mxu0
    %488 = vmatpush.msra.mxu0 %v203
    %489 = vmatpush.msra.mxu0 %v199
    %490 = vmatpush.msra.mxu0 %v195
    %491 = vmatpush.msra.mxu0 %v191
    %492 = vmatpush.msra.mxu0 %v187
    %493 = vmatpush.msra.mxu0 %v183
    %494 = vmatpush.msra.mxu0 %v179
    %495 = vmatpush.msra.mxu0 %v175
    %496 = vmatpush.msra.mxu0 %v171
    %497 = vmatpush.msra.mxu0 %v167
    %498 = vmatpush.msra.mxu0 %v163
    %499 = vmatpush.msra.mxu0 %v159
    %500 = vmatpush.msra.mxu0 %v155
    %501 = vmatpush.msra.mxu0 %v151
    %502 = vmatpush.msra.mxu0 %v147
    %503 = vmatpush.msra.mxu0 %v143
    %504 = vmatmul.f32.gmra.mxu0 %v138
    %v505 = vpop.f32.mrf.mxu0
    %v506 = vadd.f32 %v401, %v505
    %507 = vdwg.mxu0
    %508 = vmatpush.msra.mxu0 %v267
    %509 = vmatpush.msra.mxu0 %v263
    %510 = vmatpush.msra.mxu0 %v259
    %511 = vmatpush.msra.mxu0 %v255
    %512 = vmatpush.msra.mxu0 %v251
    %513 = vmatpush.msra.mxu0 %v247
    %514 = vmatpush.msra.mxu0 %v243
    %515 = vmatpush.msra.mxu0 %v239
    %516 = vmatpush.msra.mxu0 %v235
    %517 = vmatpush.msra.mxu0 %v231
    %518 = vmatpush.msra.mxu0 %v227
    %519 = vmatpush.msra.mxu0 %v223
    %520 = vmatpush.msra.mxu0 %v219
    %521 = vmatpush.msra.mxu0 %v215
    %522 = vmatpush.msra.mxu0 %v211
    %523 = vmatpush.msra.mxu0 %v207
    %524 = vmatmul.f32.gmra.mxu0 %v139
    %v525 = vpop.f32.mrf.mxu0
    %v526 = vadd.f32 %v506, %v525
    %527 = vdwg.mxu0
    %528 = vmatpush.msra.mxu0 %v331
    %529 = vmatpush.msra.mxu0 %v327
    %530 = vmatpush.msra.mxu0 %v323
    %531 = vmatpush.msra.mxu0 %v319
    %532 = vmatpush.msra.mxu0 %v315
    %533 = vmatpush.msra.mxu0 %v311
    %534 = vmatpush.msra.mxu0 %v307
    %535 = vmatpush.msra.mxu0 %v303
    %536 = vmatpush.msra.mxu0 %v299
    %537 = vmatpush.msra.mxu0 %v295
    %538 = vmatpush.msra.mxu0 %v291
    %539 = vmatpush.msra.mxu0 %v287
    %540 = vmatpush.msra.mxu0 %v283
    %541 = vmatpush.msra.mxu0 %v279
    %542 = vmatpush.msra.mxu0 %v275
    %543 = vmatpush.msra.mxu0 %v271
    %544 = vmatmul.f32.gmra.mxu0 %v140
    %v545 = vpop.f32.mrf.mxu0
    %v546 = vadd.f32 %v526, %v545
    %547 = vdwg.mxu0
    %548 = vmatpush.msra.mxu0 %v395
    %549 = vmatpush.msra.mxu0 %v391
    %550 = vmatpush.msra.mxu0 %v387
    %551 = vmatpush.msra.mxu0 %v383
    %552 = vmatpush.msra.mxu0 %v379
    %553 = vmatpush.msra.mxu0 %v375
    %554 = vmatpush.msra.mxu0 %v371
    %555 = vmatpush.msra.mxu0 %v367
    %556 = vmatpush.msra.mxu0 %v363
    %557 = vmatpush.msra.mxu0 %v359
    %558 = vmatpush.msra.mxu0 %v355
    %559 = vmatpush.msra.mxu0 %v351
    %560 = vmatpush.msra.mxu0 %v347
    %561 = vmatpush.msra.mxu0 %v343
    %562 = vmatpush.msra.mxu0 %v339
    %563 = vmatpush.msra.mxu0 %v335
    %564 = vmatmul.f32.gmra.mxu0 %v141
    %v565 = vpop.f32.mrf.mxu0
    %v566 = vadd.f32 %v546, %v565
    %567 = vdwg.mxu0
    %568 = vmatpush.msra.mxu0 %v204
    %569 = vmatpush.msra.mxu0 %v200
    %570 = vmatpush.msra.mxu0 %v196
    %571 = vmatpush.msra.mxu0 %v192
    %572 = vmatpush.msra.mxu0 %v188
    %573 = vmatpush.msra.mxu0 %v184
    %574 = vmatpush.msra.mxu0 %v180
    %575 = vmatpush.msra.mxu0 %v176
    %576 = vmatpush.msra.mxu0 %v172
    %577 = vmatpush.msra.mxu0 %v168
    %578 = vmatpush.msra.mxu0 %v164
    %579 = vmatpush.msra.mxu0 %v160
    %580 = vmatpush.msra.mxu0 %v156
    %581 = vmatpush.msra.mxu0 %v152
    %582 = vmatpush.msra.mxu0 %v148
    %583 = vmatpush.msra.mxu0 %v144
    %584 = vmatmul.f32.gmra.mxu0 %v138
    %v585 = vpop.f32.mrf.mxu0
    %v586 = vadd.f32 %v402, %v585
    %587 = vdwg.mxu0
    %588 = vmatpush.msra.mxu0 %v268
    %589 = vmatpush.msra.mxu0 %v264
    %590 = vmatpush.msra.mxu0 %v260
    %591 = vmatpush.msra.mxu0 %v256
    %592 = vmatpush.msra.mxu0 %v252
    %593 = vmatpush.msra.mxu0 %v248
    %594 = vmatpush.msra.mxu0 %v244
    %595 = vmatpush.msra.mxu0 %v240
    %596 = vmatpush.msra.mxu0 %v236
    %597 = vmatpush.msra.mxu0 %v232
    %598 = vmatpush.msra.mxu0 %v228
    %599 = vmatpush.msra.mxu0 %v224
    %600 = vmatpush.msra.mxu0 %v220
    %601 = vmatpush.msra.mxu0 %v216
    %602 = vmatpush.msra.mxu0 %v212
    %603 = vmatpush.msra.mxu0 %v208
    %604 = vmatmul.f32.gmra.mxu0 %v139
    %v605 = vpop.f32.mrf.mxu0
    %v606 = vadd.f32 %v586, %v605
    %607 = vdwg.mxu0
    %608 = vmatpush.msra.mxu0 %v332
    %609 = vmatpush.msra.mxu0 %v328
    %610 = vmatpush.msra.mxu0 %v324
    %611 = vmatpush.msra.mxu0 %v320
    %612 = vmatpush.msra.mxu0 %v316
    %613 = vmatpush.msra.mxu0 %v312
    %614 = vmatpush.msra.mxu0 %v308
    %615 = vmatpush.msra.mxu0 %v304
    %616 = vmatpush.msra.mxu0 %v300
    %617 = vmatpush.msra.mxu0 %v296
    %618 = vmatpush.msra.mxu0 %v292
    %619 = vmatpush.msra.mxu0 %v288
    %620 = vmatpush.msra.mxu0 %v284
    %621 = vmatpush.msra.mxu0 %v280
    %622 = vmatpush.msra.mxu0 %v276
    %623 = vmatpush.msra.mxu0 %v272
    %624 = vmatmul.f32.gmra.mxu0 %v140
    %v625 = vpop.f32.mrf.mxu0
    %v626 = vadd.f32 %v606, %v625
    %627 = vdwg.mxu0
    %628 = vmatpush.msra.mxu0 %v396
    %629 = vmatpush.msra.mxu0 %v392
    %630 = vmatpush.msra.mxu0 %v388
    %631 = vmatpush.msra.mxu0 %v384
    %632 = vmatpush.msra.mxu0 %v380
    %633 = vmatpush.msra.mxu0 %v376
    %634 = vmatpush.msra.mxu0 %v372
    %635 = vmatpush.msra.mxu0 %v368
    %636 = vmatpush.msra.mxu0 %v364
    %637 = vmatpush.msra.mxu0 %v360
    %638 = vmatpush.msra.mxu0 %v356
    %639 = vmatpush.msra.mxu0 %v352
    %640 = vmatpush.msra.mxu0 %v348
    %641 = vmatpush.msra.mxu0 %v344
    %642 = vmatpush.msra.mxu0 %v340
    %643 = vmatpush.msra.mxu0 %v336
    %644 = vmatmul.f32.gmra.mxu0 %v141
    %v645 = vpop.f32.mrf.mxu0
    %v646 = vadd.f32 %v626, %v645
    %647 = vdwg.mxu0
    %648 = vmatpush.msra.mxu0 %v205
    %649 = vmatpush.msra.mxu0 %v201
    %650 = vmatpush.msra.mxu0 %v197
    %651 = vmatpush.msra.mxu0 %v193
    %652 = vmatpush.msra.mxu0 %v189
    %653 = vmatpush.msra.mxu0 %v185
    %654 = vmatpush.msra.mxu0 %v181
    %655 = vmatpush.msra.mxu0 %v177
    %656 = vmatpush.msra.mxu0 %v173
    %657 = vmatpush.msra.mxu0 %v169
    %658 = vmatpush.msra.mxu0 %v165
    %659 = vmatpush.msra.mxu0 %v161
    %660 = vmatpush.msra.mxu0 %v157
    %661 = vmatpush.msra.mxu0 %v153
    %662 = vmatpush.msra.mxu0 %v149
    %663 = vmatpush.msra.mxu0 %v145
    %664 = vmatmul.f32.gmra.mxu0 %v138
    %v665 = vpop.f32.mrf.mxu0
    %v666 = vadd.f32 %v403, %v665
    %667 = vdwg.mxu0
    %668 = vmatpush.msra.mxu0 %v269
    %669 = vmatpush.msra.mxu0 %v265
    %670 = vmatpush.msra.mxu0 %v261
    %671 = vmatpush.msra.mxu0 %v257
    %672 = vmatpush.msra.mxu0 %v253
    %673 = vmatpush.msra.mxu0 %v249
    %674 = vmatpush.msra.mxu0 %v245
    %675 = vmatpush.msra.mxu0 %v241
    %676 = vmatpush.msra.mxu0 %v237
    %677 = vmatpush.msra.mxu0 %v233
    %678 = vmatpush.msra.mxu0 %v229
    %679 = vmatpush.msra.mxu0 %v225
    %680 = vmatpush.msra.mxu0 %v221
    %681 = vmatpush.msra.mxu0 %v217
    %682 = vmatpush.msra.mxu0 %v213
    %683 = vmatpush.msra.mxu0 %v209
    %684 = vmatmul.f32.gmra.mxu0 %v139
    %v685 = vpop.f32.mrf.mxu0
    %v686 = vadd.f32 %v666, %v685
    %687 = vdwg.mxu0
    %688 = vmatpush.msra.mxu0 %v333
    %689 = vmatpush.msra.mxu0 %v329
    %690 = vmatpush.msra.mxu0 %v325
    %691 = vmatpush.msra.mxu0 %v321
    %692 = vmatpush.msra.mxu0 %v317
    %693 = vmatpush.msra.mxu0 %v313
    %694 = vmatpush.msra.mxu0 %v309
    %695 = vmatpush.msra.mxu0 %v305
    %696 = vmatpush.msra.mxu0 %v301
    %697 = vmatpush.msra.mxu0 %v297
    %698 = vmatpush.msra.mxu0 %v293
    %699 = vmatpush.msra.mxu0 %v289
    %700 = vmatpush.msra.mxu0 %v285
    %701 = vmatpush.msra.mxu0 %v281
    %702 = vmatpush.msra.mxu0 %v277
    %703 = vmatpush.msra.mxu0 %v273
    %704 = vmatmul.f32.gmra.mxu0 %v140
    %v705 = vpop.f32.mrf.mxu0
    %v706 = vadd.f32 %v686, %v705
    %707 = vdwg.mxu0
    %708 = vmatpush.msra.mxu0 %v397
    %709 = vmatpush.msra.mxu0 %v393
    %710 = vmatpush.msra.mxu0 %v389
    %711 = vmatpush.msra.mxu0 %v385
    %712 = vmatpush.msra.mxu0 %v381
    %713 = vmatpush.msra.mxu0 %v377
    %714 = vmatpush.msra.mxu0 %v373
    %715 = vmatpush.msra.mxu0 %v369
    %716 = vmatpush.msra.mxu0 %v365
    %717 = vmatpush.msra.mxu0 %v361
    %718 = vmatpush.msra.mxu0 %v357
    %719 = vmatpush.msra.mxu0 %v353
    %720 = vmatpush.msra.mxu0 %v349
    %721 = vmatpush.msra.mxu0 %v345
    %722 = vmatpush.msra.mxu0 %v341
    %723 = vmatpush.msra.mxu0 %v337
    %724 = vmatmul.f32.gmra.mxu0 %v141
    %v725 = vpop.f32.mrf.mxu0
    %v726 = vadd.f32 %v706, %v725
    %727 = vdwg.mxu0
    %v728 = vmax.f32 %v486, 0.0
    %v729 = vmax.f32 %v566, 0.0
    %v730 = vmax.f32 %v646, 0.0
    %v731 = vmax.f32 %v726, 0.0
    %v732 = vld [vmem:[%s5] sm:$0xff]
    %v733 = vld [vmem:[%s5 + $0x8] sm:$0xff]
    %v734 = vld [vmem:[%s5 + $0x10] sm:$0xff]
    %v735 = vld [vmem:[%s5 + $0x18] sm:$0xff]
    %v736 = vld [vmem:[%s5 + $0x20] sm:$0xff]
    %v737 = vld [vmem:[%s5 + $0x28] sm:$0xff]
    %v738 = vld [vmem:[%s5 + $0x30] sm:$0xff]
    %v739 = vld [vmem:[%s5 + $0x38] sm:$0xff]
    %v740 = vld [vmem:[%s5 + $0x40] sm:$0xff]
    %v741 = vld [vmem:[%s5 + $0x48] sm:$0xff]
    %v742 = vld [vmem:[%s5 + $0x50] sm:$0xff]
    %v743 = vld [vmem:[%s5 + $0x58] sm:$0xff]
    %v744 = vld [vmem:[%s5 + $0x60] sm:$0xff]
    %v745 = vld [vmem:[%s5 + $0x68] sm:$0xff]
    %v746 = vld [vmem:[%s5 + $0x70] sm:$0xff]
    %v747 = vld [vmem:[%s5 + $0x78] sm:$0xff]
    %v748 = vld [vmem:[%s5 + $0x80] sm:$0xff]
    %v749 = vld [vmem:[%s5 + $0x88] sm:$0xff]
    %v750 = vld [vmem:[%s5 + $0x90] sm:$0xff]
    %v751 = vld [vmem:[%s5 + $0x98] sm:$0xff]
    %v752 = vld [vmem:[%s5 + $0xa0] sm:$0xff]
    %v753 = vld [vmem:[%s5 + $0xa8] sm:$0xff]
    %v754 = vld [vmem:[%s5 + $0xb0] sm:$0xff]
    %v755 = vld [vmem:[%s5 + $0xb8] sm:$0xff]
    %v756 = vld [vmem:[%s5 + $0xc0] sm:$0xff]
    %v757 = vld [vmem:[%s5 + $0xc8] sm:$0xff]
    %v758 = vld [vmem:[%s5 + $0xd0] sm:$0xff]
    %v759 = vld [vmem:[%s5 + $0xd8] sm:$0xff]
    %v760 = vld [vmem:[%s5 + $0xe0] sm:$0xff]
    %v761 = vld [vmem:[%s5 + $0xe8] sm:$0xff]
    %v762 = vld [vmem:[%s5 + $0xf0] sm:$0xff]
    %v763 = vld [vmem:[%s5 + $0xf8] sm:$0xff]
    %v764 = vld [vmem:[%s5 + $0x100] sm:$0xff]
    %v765 = vld [vmem:[%s5 + $0x108] sm:$0xff]
    %v766 = vld [vmem:[%s5 + $0x110] sm:$0xff]
    %v767 = vld [vmem:[%s5 + $0x118] sm:$0xff]
    %v768 = vld [vmem:[%s5 + $0x120] sm:$0xff]
    %v769 = vld [vmem:[%s5 + $0x128] sm:$0xff]
    %v770 = vld [vmem:[%s5 + $0x130] sm:$0xff]
    %v771 = vld [vmem:[%s5 + $0x138] sm:$0xff]
    %v772 = vld [vmem:[%s5 + $0x140] sm:$0xff]
    %v773 = vld [vmem:[%s5 + $0x148] sm:$0xff]
    %v774 = vld [vmem:[%s5 + $0x150] sm:$0xff]
    %v775 = vld [vmem:[%s5 + $0x158] sm:$0xff]
    %v776 = vld [vmem:[%s5 + $0x160] sm:$0xff]
    %v777 = vld [vmem:[%s5 + $0x168] sm:$0xff]
    %v778 = vld [vmem:[%s5 + $0x170] sm:$0xff]
    %v779 = vld [vmem:[%s5 + $0x178] sm:$0xff]
    %v780 = vld [vmem:[%s5 + $0x180] sm:$0xff]
    %v781 = vld [vmem:[%s5 + $0x188] sm:$0xff]
    %v782 = vld [vmem:[%s5 + $0x190] sm:$0xff]
    %v783 = vld [vmem:[%s5 + $0x198] sm:$0xff]
    %v784 = vld [vmem:[%s5 + $0x1a0] sm:$0xff]
    %v785 = vld [vmem:[%s5 + $0x1a8] sm:$0xff]
    %v786 = vld [vmem:[%s5 + $0x1b0] sm:$0xff]
    %v787 = vld [vmem:[%s5 + $0x1b8] sm:$0xff]
    %v788 = vld [vmem:[%s5 + $0x1c0] sm:$0xff]
    %v789 = vld [vmem:[%s5 + $0x1c8] sm:$0xff]
    %v790 = vld [vmem:[%s5 + $0x1d0] sm:$0xff]
    %v791 = vld [vmem:[%s5 + $0x1d8] sm:$0xff]
    %v792 = vld [vmem:[%s5 + $0x1e0] sm:$0xff]
    %v793 = vld [vmem:[%s5 + $0x1e8] sm:$0xff]
    %v794 = vld [vmem:[%s5 + $0x1f0] sm:$0xff]
    %v795 = vld [vmem:[%s5 + $0x1f8] sm:$0xff]
    %v796 = vld [vmem:[%s5 + $0x200] sm:$0xff]
    %v797 = vld [vmem:[%s5 + $0x208] sm:$0xff]
    %v798 = vld [vmem:[%s5 + $0x210] sm:$0xff]
    %v799 = vld [vmem:[%s5 + $0x218] sm:$0xff]
    %v800 = vld [vmem:[%s5 + $0x220] sm:$0xff]
    %v801 = vld [vmem:[%s5 + $0x228] sm:$0xff]
    %v802 = vld [vmem:[%s5 + $0x230] sm:$0xff]
    %v803 = vld [vmem:[%s5 + $0x238] sm:$0xff]
    %v804 = vld [vmem:[%s5 + $0x240] sm:$0xff]
    %v805 = vld [vmem:[%s5 + $0x248] sm:$0xff]
    %v806 = vld [vmem:[%s5 + $0x250] sm:$0xff]
    %v807 = vld [vmem:[%s5 + $0x258] sm:$0xff]
    %v808 = vld [vmem:[%s5 + $0x260] sm:$0xff]
    %v809 = vld [vmem:[%s5 + $0x268] sm:$0xff]
    %v810 = vld [vmem:[%s5 + $0x270] sm:$0xff]
    %v811 = vld [vmem:[%s5 + $0x278] sm:$0xff]
    %v812 = vld [vmem:[%s5 + $0x280] sm:$0xff]
    %v813 = vld [vmem:[%s5 + $0x288] sm:$0xff]
    %v814 = vld [vmem:[%s5 + $0x290] sm:$0xff]
    %v815 = vld [vmem:[%s5 + $0x298] sm:$0xff]
    %v816 = vld [vmem:[%s5 + $0x2a0] sm:$0xff]
    %v817 = vld [vmem:[%s5 + $0x2a8] sm:$0xff]
    %v818 = vld [vmem:[%s5 + $0x2b0] sm:$0xff]
    %v819 = vld [vmem:[%s5 + $0x2b8] sm:$0xff]
    %v820 = vld [vmem:[%s5 + $0x2c0] sm:$0xff]
    %v821 = vld [vmem:[%s5 + $0x2c8] sm:$0xff]
    %v822 = vld [vmem:[%s5 + $0x2d0] sm:$0xff]
    %v823 = vld [vmem:[%s5 + $0x2d8] sm:$0xff]
    %v824 = vld [vmem:[%s5 + $0x2e0] sm:$0xff]
    %v825 = vld [vmem:[%s5 + $0x2e8] sm:$0xff]
    %v826 = vld [vmem:[%s5 + $0x2f0] sm:$0xff]
    %v827 = vld [vmem:[%s5 + $0x2f8] sm:$0xff]
    %v828 = vld [vmem:[%s5 + $0x300] sm:$0xff]
    %v829 = vld [vmem:[%s5 + $0x308] sm:$0xff]
    %v830 = vld [vmem:[%s5 + $0x310] sm:$0xff]
    %v831 = vld [vmem:[%s5 + $0x318] sm:$0xff]
    %v832 = vld [vmem:[%s5 + $0x320] sm:$0xff]
    %v833 = vld [vmem:[%s5 + $0x328] sm:$0xff]
    %v834 = vld [vmem:[%s5 + $0x330] sm:$0xff]
    %v835 = vld [vmem:[%s5 + $0x338] sm:$0xff]
    %v836 = vld [vmem:[%s5 + $0x340] sm:$0xff]
    %v837 = vld [vmem:[%s5 + $0x348] sm:$0xff]
    %v838 = vld [vmem:[%s5 + $0x350] sm:$0xff]
    %v839 = vld [vmem:[%s5 + $0x358] sm:$0xff]
    %v840 = vld [vmem:[%s5 + $0x360] sm:$0xff]
    %v841 = vld [vmem:[%s5 + $0x368] sm:$0xff]
    %v842 = vld [vmem:[%s5 + $0x370] sm:$0xff]
    %v843 = vld [vmem:[%s5 + $0x378] sm:$0xff]
    %v844 = vld [vmem:[%s5 + $0x380] sm:$0xff]
    %v845 = vld [vmem:[%s5 + $0x388] sm:$0xff]
    %v846 = vld [vmem:[%s5 + $0x390] sm:$0xff]
    %v847 = vld [vmem:[%s5 + $0x398] sm:$0xff]
    %v848 = vld [vmem:[%s5 + $0x3a0] sm:$0xff]
    %v849 = vld [vmem:[%s5 + $0x3a8] sm:$0xff]
    %v850 = vld [vmem:[%s5 + $0x3b0] sm:$0xff]
    %v851 = vld [vmem:[%s5 + $0x3b8] sm:$0xff]
    %v852 = vld [vmem:[%s5 + $0x3c0] sm:$0xff]
    %v853 = vld [vmem:[%s5 + $0x3c8] sm:$0xff]
    %v854 = vld [vmem:[%s5 + $0x3d0] sm:$0xff]
    %v855 = vld [vmem:[%s5 + $0x3d8] sm:$0xff]
    %v856 = vld [vmem:[%s5 + $0x3e0] sm:$0xff]
    %v857 = vld [vmem:[%s5 + $0x3e8] sm:$0xff]
    %v858 = vld [vmem:[%s5 + $0x3f0] sm:$0xff]
    %v859 = vld [vmem:[%s5 + $0x3f8] sm:$0xff]
    %v860 = vld [vmem:[%s6] sm:$0x3]
    %v862 = vperm.slane %v860, 0
    %v863 = vperm.slane %v860, 1
    %866 = vmatpush.msra.mxu0 %v762
    %867 = vmatpush.msra.mxu0 %v760
    %868 = vmatpush.msra.mxu0 %v758
    %869 = vmatpush.msra.mxu0 %v756
    %870 = vmatpush.msra.mxu0 %v754
    %871 = vmatpush.msra.mxu0 %v752
    %872 = vmatpush.msra.mxu0 %v750
    %873 = vmatpush.msra.mxu0 %v748
    %874 = vmatpush.msra.mxu0 %v746
    %875 = vmatpush.msra.mxu0 %v744
    %876 = vmatpush.msra.mxu0 %v742
    %877 = vmatpush.msra.mxu0 %v740
    %878 = vmatpush.msra.mxu0 %v738
    %879 = vmatpush.msra.mxu0 %v736
    %880 = vmatpush.msra.mxu0 %v734
    %881 = vmatpush.msra.mxu0 %v732
    %882 = vmatmul.f32.gmra.mxu0 %v728
    %v883 = vpop.f32.mrf.mxu0
    %v884 = vadd.f32 %v862, %v883
    %885 = vdwg.mxu0
    %886 = vmatpush.msra.mxu0 %v794
    %887 = vmatpush.msra.mxu0 %v792
    %888 = vmatpush.msra.mxu0 %v790
    %889 = vmatpush.msra.mxu0 %v788
    %890 = vmatpush.msra.mxu0 %v786
    %891 = vmatpush.msra.mxu0 %v784
    %892 = vmatpush.msra.mxu0 %v782
    %893 = vmatpush.msra.mxu0 %v780
    %894 = vmatpush.msra.mxu0 %v778
    %895 = vmatpush.msra.mxu0 %v776
    %896 = vmatpush.msra.mxu0 %v774
    %897 = vmatpush.msra.mxu0 %v772
    %898 = vmatpush.msra.mxu0 %v770
    %899 = vmatpush.msra.mxu0 %v768
    %900 = vmatpush.msra.mxu0 %v766
    %901 = vmatpush.msra.mxu0 %v764
    %902 = vmatmul.f32.gmra.mxu0 %v729
    %v903 = vpop.f32.mrf.mxu0
    %v904 = vadd.f32 %v884, %v903
    %905 = vdwg.mxu0
    %906 = vmatpush.msra.mxu0 %v826
    %907 = vmatpush.msra.mxu0 %v824
    %908 = vmatpush.msra.mxu0 %v822
    %909 = vmatpush.msra.mxu0 %v820
    %910 = vmatpush.msra.mxu0 %v818
    %911 = vmatpush.msra.mxu0 %v816
    %912 = vmatpush.msra.mxu0 %v814
    %913 = vmatpush.msra.mxu0 %v812
    %914 = vmatpush.msra.mxu0 %v810
    %915 = vmatpush.msra.mxu0 %v808
    %916 = vmatpush.msra.mxu0 %v806
    %917 = vmatpush.msra.mxu0 %v804
    %918 = vmatpush.msra.mxu0 %v802
    %919 = vmatpush.msra.mxu0 %v800
    %920 = vmatpush.msra.mxu0 %v798
    %921 = vmatpush.msra.mxu0 %v796
    %922 = vmatmul.f32.gmra.mxu0 %v730
    %v923 = vpop.f32.mrf.mxu0
    %v924 = vadd.f32 %v904, %v923
    %925 = vdwg.mxu0
    %926 = vmatpush.msra.mxu0 %v858
    %927 = vmatpush.msra.mxu0 %v856
    %928 = vmatpush.msra.mxu0 %v854
    %929 = vmatpush.msra.mxu0 %v852
    %930 = vmatpush.msra.mxu0 %v850
    %931 = vmatpush.msra.mxu0 %v848
    %932 = vmatpush.msra.mxu0 %v846
    %933 = vmatpush.msra.mxu0 %v844
    %934 = vmatpush.msra.mxu0 %v842
    %935 = vmatpush.msra.mxu0 %v840
    %936 = vmatpush.msra.mxu0 %v838
    %937 = vmatpush.msra.mxu0 %v836
    %938 = vmatpush.msra.mxu0 %v834
    %939 = vmatpush.msra.mxu0 %v832
    %940 = vmatpush.msra.mxu0 %v830
    %941 = vmatpush.msra.mxu0 %v828
    %942 = vmatmul.f32.gmra.mxu0 %v731
    %v943 = vpop.f32.mrf.mxu0
    %v944 = vadd.f32 %v924, %v943
    %945 = vdwg.mxu0
    %946 = vmatpush.msra.mxu0 %v763
    %947 = vmatpush.msra.mxu0 %v761
    %948 = vmatpush.msra.mxu0 %v759
    %949 = vmatpush.msra.mxu0 %v757
    %950 = vmatpush.msra.mxu0 %v755
    %951 = vmatpush.msra.mxu0 %v753
    %952 = vmatpush.msra.mxu0 %v751
    %953 = vmatpush.msra.mxu0 %v749
    %954 = vmatpush.msra.mxu0 %v747
    %955 = vmatpush.msra.mxu0 %v745
    %956 = vmatpush.msra.mxu0 %v743
    %957 = vmatpush.msra.mxu0 %v741
    %958 = vmatpush.msra.mxu0 %v739
    %959 = vmatpush.msra.mxu0 %v737
    %960 = vmatpush.msra.mxu0 %v735
    %961 = vmatpush.msra.mxu0 %v733
    %962 = vmatmul.f32.gmra.mxu0 %v728
    %v963 = vpop.f32.mrf.mxu0
    %v964 = vadd.f32 %v863, %v963
    %965 = vdwg.mxu0
    %966 = vmatpush.msra.mxu0 %v795
    %967 = vmatpush.msra.mxu0 %v793
    %968 = vmatpush.msra.mxu0 %v791
    %969 = vmatpush.msra.mxu0 %v789
    %970 = vmatpush.msra.mxu0 %v787
    %971 = vmatpush.msra.mxu0 %v785
    %972 = vmatpush.msra.mxu0 %v783
    %973 = vmatpush.msra.mxu0 %v781
    %974 = vmatpush.msra.mxu0 %v779
    %975 = vmatpush.msra.mxu0 %v777
    %976 = vmatpush.msra.mxu0 %v775
    %977 = vmatpush.msra.mxu0 %v773
    %978 = vmatpush.msra.mxu0 %v771
    %979 = vmatpush.msra.mxu0 %v769
    %980 = vmatpush.msra.mxu0 %v767
    %981 = vmatpush.msra.mxu0 %v765
    %982 = vmatmul.f32.gmra.mxu0 %v729
    %v983 = vpop.f32.mrf.mxu0
    %v984 = vadd.f32 %v964, %v983
    %985 = vdwg.mxu0
    %986 = vmatpush.msra.mxu0 %v827
    %987 = vmatpush.msra.mxu0 %v825
    %988 = vmatpush.msra.mxu0 %v823
    %989 = vmatpush.msra.mxu0 %v821
    %990 = vmatpush.msra.mxu0 %v819
    %991 = vmatpush.msra.mxu0 %v817
    %992 = vmatpush.msra.mxu0 %v815
    %993 = vmatpush.msra.mxu0 %v813
    %994 = vmatpush.msra.mxu0 %v811
    %995 = vmatpush.msra.mxu0 %v809
    %996 = vmatpush.msra.mxu0 %v807
    %997 = vmatpush.msra.mxu0 %v805
    %998 = vmatpush.msra.mxu0 %v803
    %999 = vmatpush.msra.mxu0 %v801
    %1000 = vmatpush.msra.mxu0 %v799
    %1001 = vmatpush.msra.mxu0 %v797
    %1002 = vmatmul.f32.gmra.mxu0 %v730
    %v1003 = vpop.f32.mrf.mxu0
    %v1004 = vadd.f32 %v984, %v1003
    %1005 = vdwg.mxu0
    %1006 = vmatpush.msra.mxu0 %v859
    %1007 = vmatpush.msra.mxu0 %v857
    %1008 = vmatpush.msra.mxu0 %v855
    %1009 = vmatpush.msra.mxu0 %v853
    %1010 = vmatpush.msra.mxu0 %v851
    %1011 = vmatpush.msra.mxu0 %v849
    %1012 = vmatpush.msra.mxu0 %v847
    %1013 = vmatpush.msra.mxu0 %v845
    %1014 = vmatpush.msra.mxu0 %v843
    %1015 = vmatpush.msra.mxu0 %v841
    %1016 = vmatpush.msra.mxu0 %v839
    %1017 = vmatpush.msra.mxu0 %v837
    %1018 = vmatpush.msra.mxu0 %v835
    %1019 = vmatpush.msra.mxu0 %v833
    %1020 = vmatpush.msra.mxu0 %v831
    %1021 = vmatpush.msra.mxu0 %v829
    %1022 = vmatmul.f32.gmra.mxu0 %v731
    %v1023 = vpop.f32.mrf.mxu0
    %v1024 = vadd.f32 %v1004, %v1023
    %1025 = vdwg.mxu0
    %v1026 = vmax.f32 %v944, 0.0
    %v1027 = vmax.f32 %v1024, 0.0
    %1028 = vst [vmem:[#allocation2] sm:$0xff] %v1026
    %1029 = vst [vmem:[#allocation2 + $0x8] sm:$0xff] %v1027
    // Predicated region
    $region30: #{mlp_forward.1} parent=1 // pred_check
      _
    $region31: #{mlp_forward.1} parent=1 // pred_check_branch
      %1031 = sbr.rel (0) target = $region33
    $region32: #{mlp_forward.1} parent=1 // pred_region
      %1033 = vsyncadd [#allocation3], 0
      %s1035 = sshll.u32 [#allocation2], 4
      %s1036 = int_to_ptr.vmem [resolvable:$true] %s1035
      %s1037 = sshll.u32 %s7, 4
      %s1038 = int_to_ptr.hbm [resolvable:$true] %s1037
      %1040 = dma.vmem_to_hbm [thread:$0]  %s1036, 256, %s1038, [#allocation3]
    $region33: #{mlp_forward.1} parent=1 // pred_fallthru
      _
    // Predicated region
    $region34: #{mlp_forward.1} parent=1 // pred_check
      _
    $region35: #{mlp_forward.1} parent=1 // pred_check_branch
      %1042 = sbr.rel (0) target = $region37
    $region36: #{mlp_forward.1} parent=1 // pred_region
      %1044 = dma.done [#allocation3], 256
    $region37: #{mlp_forward.1} parent=1 // pred_fallthru
      _
    %1045 = vsyncpa [#allocation3], 1

</llo_original>
